<compile_context>
chip_gen: v7x
topology: tpu7x:2x2x1
jax: 0.10.0
libtpu: 0.0.40
codegen_flags: <defaults>
</compile_context>

<pallas_src>
import functools
import math

import jax
import jax.numpy as jnp
from jax.experimental import pallas as pl
from jax.experimental.pallas import tpu as pltpu

EPS = 1e-08


def _temporal_block_kernel(slopes_ref, x_ref, w1_ref, g1_ref, b1_ref,
                           dw_ref, g2_ref, b2_ref, w2_ref, o_ref, h2s_ref,
                           *, m_tile, kp, k, tap_shifts):
    H = w1_ref.shape[0]
    inv_count = 1.0 / float(H * k)

    a1 = slopes_ref[0]                       # PReLU slope after conv1x1
    a2 = slopes_ref[1]                       # PReLU slope after depthwise conv
    g1 = g1_ref[...].astype(jnp.float32)     # (H, 1)
    b1 = b1_ref[...].astype(jnp.float32)
    g2 = g2_ref[...].astype(jnp.float32)
    b2 = b2_ref[...].astype(jnp.float32)
    dw = dw_ref[...].astype(jnp.float32)     # (H, P)

    # --- 1x1 conv for the whole batch tile: ONE wide MXU matmul (operands in
    #     native dtype, f32 accumulation), then PReLU #1. ---
    h = jnp.dot(w1_ref[...], x_ref[...],
                preferred_element_type=jnp.float32)            # (H, m_tile*kp)
    h = jnp.where(h > 0, h, a1 * h)

    # --- per-tap depthwise coefficients with the 'same' zero-padding boundary
    #     mask folded in; computed once per grid step (hoisted out of the
    #     per-sample loop). ---
    cols = jax.lax.broadcasted_iota(jnp.int32, (1, kp), 1)
    masked_taps = []
    for p, s in enumerate(tap_shifts):
        lo = max(0, -s)
        hi = min(k, k - s)
        valid = (cols >= lo) & (cols < hi)
        masked_taps.append(jnp.where(valid, dw[:, p:p + 1], 0.0))   # (H, kp)
    in_range = cols < k

    def gln_stats(y):
        # Exact two-pass gLN statistics for one sample; `y` is (H, kp) f32 and
        # is guaranteed zero in the k..kp lane-padding columns (so the sum is
        # exact); the centered pass masks the pad columns explicitly.
        mean = jnp.sum(y) * inv_count
        d = y - mean
        if kp != k:
            d = jnp.where(in_range, d, 0.0)
        var = jnp.sum(d * d) * inv_count
        inv = jax.lax.rsqrt(var + EPS)
        return mean, inv

    # gLN#2 shift folded into the pointwise conv:
    #   w2 @ shift2 = w2@beta2 - (mean2*inv2) * (w2@gamma2)
    w2f = w2_ref[...].astype(jnp.float32)
    wb2 = jnp.dot(w2f, b2, preferred_element_type=jnp.float32)      # (C, 1)
    wg2 = jnp.dot(w2f, g2, preferred_element_type=jnp.float32)      # (C, 1)

    # Per-sample part: gLN statistics + depthwise conv.  Static unroll; the
    # wrapper keeps m_tile small (<= 8).
    # TODO(synk): switch to lax.fori_loop with pl.ds slices if m_tile is ever
    # allowed to grow past ~8 (bounds vreg live ranges / compile time).
    biases = []
    for m in range(m_tile):
        sl = slice(m * kp, (m + 1) * kp)                  # lane-aligned slice
        hm = h[:, sl]                                     # (H, kp) f32

        # gLN #1 (full scale + shift apply)
        mean1, inv1 = gln_stats(hm)
        scale1 = g1 * inv1
        shift1 = b1 - mean1 * scale1
        h1 = hm * scale1 + shift1

        # Depthwise conv: one XLU roll + one FMA per tap (mask pre-folded
        # into the coefficient, so out-of-range / wrapped columns contribute 0).
        acc = None
        for p, s in enumerate(tap_shifts):
            rolled = h1 if s == 0 else pltpu.roll(h1, shift=(-s) % kp, axis=1)
            term = masked_taps[p] * rolled
            acc = term if acc is None else acc + term

        # PReLU #2; gLN #2 with its affine folded into the pointwise conv:
        #   w2 @ (h2*scale2 + shift2) = w2 @ (h2*scale2) + (w2 @ shift2)
        h2 = jnp.where(acc > 0, acc, a2 * acc)
        mean2, inv2 = gln_stats(h2)
        h2s_ref[:, sl] = (h2 * (g2 * inv2)).astype(h2s_ref.dtype)
        biases.append(wb2 - (mean2 * inv2) * wg2)         # (C, 1) = w2 @ shift2

    # --- pointwise 1x1 conv for the whole batch tile: ONE wide MXU matmul,
    #     then the per-sample gLN#2 shift term + residual. ---
    out = jnp.dot(w2_ref[...], h2s_ref[...],
                  preferred_element_type=jnp.float32)     # (C, m_tile*kp)
    for m in range(m_tile):
        sl = slice(m * kp, (m + 1) * kp)
        res = x_ref[:, sl].astype(jnp.float32)
        o_ref[:, sl] = (out[:, sl] + biases[m] + res).astype(o_ref.dtype)


def _round_up(a, b):
    return (a + b - 1) // b * b


def _choose_tiling(M, C, H, Kp, P, in_bytes, out_bytes):
    """Pick (m_tile, n_steps, vmem_limit_bytes) from real VMEM accounting."""
    try:
        cap = int(pltpu.get_tpu_info().vmem_capacity_bytes)
    except Exception:
        cap = 64 << 20                  # conservative default (v7x per-TC)
    # Per-grid-step working-set target: big tiles amortize the ~0.35us/step
    # overhead; ~cap/3 leaves room for double buffering (caps v7x at ~21 MiB,
    # v5e/v6e at 40 MiB).
    budget = min(cap // 3, 40 << 20)

    # Bytes independent of m_tile: masked taps + a few (H,Kp) f32 temps +
    # (double-buffered) weights / gLN params + slack.
    fixed = 4 * Kp * H * (P + 4) + 8 * (H * C + C * H + H * P + 8 * H) + (1 << 20)
    # Bytes per extra sample in the tile: 2x double-buffered in/out slabs in
    # their real dtypes, the h2 scratch slab, and the f32 h/out temporaries.
    per_m = Kp * (2 * C * in_bytes + 2 * C * out_bytes + H * in_bytes
                  + 4 * H + 4 * C)

    fit = max(1, (budget - fixed) // per_m)
    fit = int(min(fit, 8, max(M, 1)))   # cap the static per-sample unroll

    steps = -(-M // fit)
    if M >= 2:
        steps = max(steps, 2)           # keep both TensorCores busy on 2-TC parts
    if steps > 1 and steps % 2:
        steps += 1                      # even step count for the "parallel" axis
    m_tile = -(-M // steps)

    need = fixed + per_m * m_tile
    vmem_limit = max(2 * need, 32 << 20, need + (4 << 20))
    vmem_limit = int(min(vmem_limit, cap * 9 // 10))
    return m_tile, steps, vmem_limit


def temporal_block(x, w1, slope1, gamma1, beta1, dw, slope2, gamma2, beta2, w2,
                   *, kernel_size, stride=1, padding=0, dilation=1):
    """TemporalBlock forward.

    x: [M, C, K];  w1: [H, C];  dw: [H, P];  w2: [C, H]
    gamma*/beta*: [H, 1] gLN affine;  slope1/slope2: scalar PReLU slopes.
    """
    M, C, K = x.shape
    H = w1.shape[0]
    P = dw.shape[1]
    assert kernel_size == P
    assert stride == 1, "residual connection requires stride == 1"
    assert 2 * padding == dilation * (kernel_size - 1), \
        "residual connection requires a 'same'-length depthwise conv"
    # TODO(synk): zero-padding the C/H contraction dims to the MXU tile needs
    # H-aware gLN denominators and adds no useful MXU throughput for zero
    # columns, so it is deliberately left out.

    Kp = max(128, _round_up(K, 128))               # lane-dense length
    in_bytes = x.dtype.itemsize
    m_tile, steps, vmem_limit = _choose_tiling(M, C, H, Kp, P, in_bytes, in_bytes)
    Mp = m_tile * steps
    T = m_tile * Kp

    # Channels-major, lane-padded 2-D layout: columns m*Kp..(m+1)*Kp of x2 are
    # sample m.  Zero padding keeps the in-kernel gLN sums exact.
    xp = jnp.pad(x, ((0, Mp - M), (0, 0), (0, Kp - K)))
    x2 = jnp.transpose(xp, (1, 0, 2)).reshape(C, Mp * Kp)

    slopes = jnp.stack([jnp.asarray(slope1, jnp.float32),
                        jnp.asarray(slope2, jnp.float32)])      # (2,) in SMEM

    tap_shifts = tuple(p * dilation - padding for p in range(P))

    kernel = functools.partial(
        _temporal_block_kernel,
        m_tile=m_tile, kp=Kp, k=K, tap_shifts=tap_shifts)

    const = lambda i: (0, 0)
    out2 = pl.pallas_call(
        kernel,
        out_shape=jax.ShapeDtypeStruct((C, Mp * Kp), x.dtype),
        grid_spec=pltpu.PrefetchScalarGridSpec(
            num_scalar_prefetch=0,
            grid=(steps,),
            in_specs=[
                # PReLU slopes: tiny scalar vector, lives in SMEM.
                pl.BlockSpec(memory_space=pltpu.MemorySpace.SMEM),
                # Activations: m_tile samples, lane-dense (C, m_tile*Kp) slab.
                pl.BlockSpec((C, T), lambda i: (0, i)),
                # Weights / gLN affine: full arrays, constant index_map
                # (stay VMEM-resident across all grid steps).
                pl.BlockSpec((H, C), const),     # w1
                pl.BlockSpec((H, 1), const),     # gamma1
                pl.BlockSpec((H, 1), const),     # beta1
                pl.BlockSpec((H, P), const),     # depthwise taps
                pl.BlockSpec((H, 1), const),     # gamma2
                pl.BlockSpec((H, 1), const),     # beta2
                pl.BlockSpec((C, H), const),     # w2
            ],
            out_specs=pl.BlockSpec((C, T), lambda i: (0, i)),
            scratch_shapes=[pltpu.VMEM((H, T), x.dtype)],   # scaled h2 slab
        ),
        compiler_params=pltpu.CompilerParams(
            dimension_semantics=("parallel",),
            vmem_limit_bytes=vmem_limit),
    )(slopes, x2, w1, gamma1, beta1, dw, gamma2, beta2, w2)

    out = out2.reshape(C, Mp, Kp).transpose(1, 0, 2)
    return out[:M, :, :K]


# ----------------------------- pure-JAX reference ----------------------------

def _gln_ref(y, gamma, beta):
    mean = jnp.mean(jnp.mean(y, axis=1, keepdims=True), axis=2, keepdims=True)
    var = jnp.mean(jnp.mean((y - mean) ** 2, axis=1, keepdims=True),
                   axis=2, keepdims=True)
    return gamma * (y - mean) / jnp.sqrt(var + EPS) + beta


def temporal_block_ref(x, w1, a1, g1, b1, dw, a2, g2, b2, w2,
                       *, padding, dilation):
    M, C, K = x.shape
    H, P = dw.shape
    h = jnp.einsum('hc,mck->mhk', w1, x)
    h = jnp.where(h > 0, h, a1 * h)
    h = _gln_ref(h, g1.reshape(1, H, 1), b1.reshape(1, H, 1))
    hp = jnp.pad(h, ((0, 0), (0, 0), (padding, padding)))
    acc = jnp.zeros_like(h)
    for p in range(P):
        acc = acc + dw[None, :, p:p + 1] * hp[:, :, p * dilation:p * dilation + K]
    h2 = jnp.where(acc > 0, acc, a2 * acc)
    h2 = _gln_ref(h2, g2.reshape(1, H, 1), b2.reshape(1, H, 1))
    out = jnp.einsum('ch,mhk->mck', w2, h2)
    return out + x


if __name__ == "__main__":
    def run_check(M, C, H, K, kernel_size, dilation):
        padding = (kernel_size - 1) * dilation // 2   # 'same' length
        key = jax.random.PRNGKey(0)
        kx, k1, k2, k3, kg1, kb1, kg2, kb2 = jax.random.split(key, 8)

        x = jax.random.normal(kx, (M, C, K), dtype=jnp.float32)
        w1 = jax.random.normal(k1, (H, C), dtype=jnp.float32) / math.sqrt(C)
        dw = jax.random.normal(k2, (H, kernel_size), dtype=jnp.float32) / math.sqrt(kernel_size)
        w2 = jax.random.normal(k3, (C, H), dtype=jnp.float32) / math.sqrt(H)
        slope1 = jnp.float32(0.25)    # torch PReLU default init
        slope2 = jnp.float32(0.2)
        gamma1 = 1.0 + 0.1 * jax.random.normal(kg1, (H, 1), dtype=jnp.float32)
        beta1 = 0.1 * jax.random.normal(kb1, (H, 1), dtype=jnp.float32)
        gamma2 = 1.0 + 0.1 * jax.random.normal(kg2, (H, 1), dtype=jnp.float32)
        beta2 = 0.1 * jax.random.normal(kb2, (H, 1), dtype=jnp.float32)

        out = temporal_block(x, w1, slope1, gamma1, beta1, dw, slope2, gamma2,
                             beta2, w2, kernel_size=kernel_size, stride=1,
                             padding=padding, dilation=dilation)
        out = jax.block_until_ready(out)

        ref = temporal_block_ref(x, w1, slope1, gamma1, beta1, dw, slope2,
                                 gamma2, beta2, w2, padding=padding,
                                 dilation=dilation)
        assert out.shape == (M, C, K)
        err = float(jnp.max(jnp.abs(out - ref)))
        assert jnp.allclose(out, ref, atol=2e-4, rtol=2e-4), \
            f"mismatch (M={M}, K={K}), max err {err}"

    # Small shapes consistent with the module: batch=2, in_channels C=8,
    # bottleneck channels H=16, length K=128, depthwise kernel 3.
    run_check(M=2, C=8, H=16, K=128, kernel_size=3, dilation=1)
    # Ragged K (lane-padded in the wrapper), odd batch (padded to the tile),
    # dilated taps — exercises the masking / batching paths.
    run_check(M=3, C=8, H=16, K=100, kernel_size=3, dilation=2)

    print("KERNEL_OK")
</pallas_src>

<mosaic_0001>
module attributes {stable_mosaic.version = 11 : i64} {
  func.func @_temporal_block_kernel(%arg0: i32, %arg1: memref<2xf32, #tpu.memory_space<smem>>, %arg2: memref<8x128xf32, #tpu.memory_space<vmem>>, %arg3: memref<16x8xf32, #tpu.memory_space<vmem>>, %arg4: memref<16x1xf32, #tpu.memory_space<vmem>>, %arg5: memref<16x1xf32, #tpu.memory_space<vmem>>, %arg6: memref<16x3xf32, #tpu.memory_space<vmem>>, %arg7: memref<16x1xf32, #tpu.memory_space<vmem>>, %arg8: memref<16x1xf32, #tpu.memory_space<vmem>>, %arg9: memref<8x16xf32, #tpu.memory_space<vmem>>, %arg10: memref<8x128xf32, #tpu.memory_space<vmem>>, %arg11: memref<16x128xf32, #tpu.memory_space<vmem>>) attributes {dimension_semantics = [#tpu.dimension_semantics<parallel>], iteration_bounds = array<i64: 2>, scalar_prefetch = 0 : i64, scratch_operands = 1 : i64, tpu.core_type = #tpu.core_type<tc>, window_params = [{transform_indices = @transform_0, window_bounds = array<i64: 2>}, {transform_indices = @transform_1, window_bounds = array<i64: 8, 128>}, {pipeline_mode = #tpu.pipeline_mode<synchronous>, transform_indices = @transform_2, window_bounds = array<i64: 16, 8>}, {pipeline_mode = #tpu.pipeline_mode<synchronous>, transform_indices = @transform_3, window_bounds = array<i64: 16, 1>}, {pipeline_mode = #tpu.pipeline_mode<synchronous>, transform_indices = @transform_4, window_bounds = array<i64: 16, 1>}, {pipeline_mode = #tpu.pipeline_mode<synchronous>, transform_indices = @transform_5, window_bounds = array<i64: 16, 3>}, {pipeline_mode = #tpu.pipeline_mode<synchronous>, transform_indices = @transform_6, window_bounds = array<i64: 16, 1>}, {pipeline_mode = #tpu.pipeline_mode<synchronous>, transform_indices = @transform_7, window_bounds = array<i64: 16, 1>}, {pipeline_mode = #tpu.pipeline_mode<synchronous>, transform_indices = @transform_8, window_bounds = array<i64: 8, 16>}, {transform_indices = @transform_9, window_bounds = array<i64: 8, 128>}]} {
    %c0 = arith.constant 0 : index
    %0 = memref.load %arg1[%c0] : memref<2xf32, #tpu.memory_space<smem>>
    %c1 = arith.constant 1 : index
    %1 = memref.load %arg1[%c1] : memref<2xf32, #tpu.memory_space<smem>>
    %c0_0 = arith.constant 0 : index
    %c0_1 = arith.constant 0 : index
    %2 = vector.load %arg4[%c0_0, %c0_1] : memref<16x1xf32, #tpu.memory_space<vmem>>, vector<16x1xf32>
    %c0_2 = arith.constant 0 : index
    %c0_3 = arith.constant 0 : index
    %3 = vector.load %arg5[%c0_2, %c0_3] : memref<16x1xf32, #tpu.memory_space<vmem>>, vector<16x1xf32>
    %c0_4 = arith.constant 0 : index
    %c0_5 = arith.constant 0 : index
    %4 = vector.load %arg7[%c0_4, %c0_5] : memref<16x1xf32, #tpu.memory_space<vmem>>, vector<16x1xf32>
    %c0_6 = arith.constant 0 : index
    %c0_7 = arith.constant 0 : index
    %5 = vector.load %arg8[%c0_6, %c0_7] : memref<16x1xf32, #tpu.memory_space<vmem>>, vector<16x1xf32>
    %c0_8 = arith.constant 0 : index
    %c0_9 = arith.constant 0 : index
    %6 = vector.load %arg6[%c0_8, %c0_9] : memref<16x3xf32, #tpu.memory_space<vmem>>, vector<16x3xf32>
    %c0_10 = arith.constant 0 : index
    %c0_11 = arith.constant 0 : index
    %7 = vector.load %arg3[%c0_10, %c0_11] : memref<16x8xf32, #tpu.memory_space<vmem>>, vector<16x8xf32>
    %c0_12 = arith.constant 0 : index
    %c0_13 = arith.constant 0 : index
    %8 = vector.load %arg2[%c0_12, %c0_13] : memref<8x128xf32, #tpu.memory_space<vmem>>, vector<8x128xf32>
    %cst = arith.constant dense<0.000000e+00> : vector<16x128xf32>
    %9 = tpu.matmul %7, %8, %cst {dimension_numbers = #tpu.dot_dimension_numbers<[1], [0], [0], [1], [0, 0, 1, 1], [], []>} : vector<16x8xf32>, vector<8x128xf32>, vector<16x128xf32> -> vector<16x128xf32>
    %cst_14 = arith.constant 0.000000e+00 : f32
    %10 = vector.broadcast %cst_14 : f32 to vector<16x128xf32>
    %11 = arith.cmpf ogt, %9, %10 : vector<16x128xf32>
    %12 = vector.broadcast %0 : f32 to vector<16x128xf32>
    %13 = arith.mulf %12, %9 : vector<16x128xf32>
    %14 = arith.select %11, %9, %13 : vector<16x128xi1>, vector<16x128xf32>
    %15 = tpu.iota {dimensions = array<i32: 1>} : vector<1x128xi32>
    %c1_i32 = arith.constant 1 : i32
    %16 = vector.broadcast %c1_i32 : i32 to vector<1x128xi32>
    %17 = arith.cmpi sge, %15, %16 : vector<1x128xi32>
    %c128_i32 = arith.constant 128 : i32
    %18 = vector.broadcast %c128_i32 : i32 to vector<1x128xi32>
    %19 = arith.cmpi slt, %15, %18 : vector<1x128xi32>
    %20 = arith.andi %17, %19 : vector<1x128xi1>
    %21 = vector.extract_strided_slice %6 {offsets = [0, 0], sizes = [16, 1], strides = [1, 1]} : vector<16x3xf32> to vector<16x1xf32>
    %cst_15 = arith.constant 0.000000e+00 : f32
    %22 = vector.shape_cast %20 : vector<1x128xi1> to vector<1x128xi1>
    %23 = vector.broadcast %22 : vector<1x128xi1> to vector<16x128xi1>
    %24 = vector.shape_cast %21 : vector<16x1xf32> to vector<16x1xf32>
    %25 = vector.broadcast %24 : vector<16x1xf32> to vector<16x128xf32>
    %26 = vector.broadcast %cst_15 : f32 to vector<16x128xf32>
    %27 = arith.select %23, %25, %26 : vector<16x128xi1>, vector<16x128xf32>
    %c0_i32 = arith.constant 0 : i32
    %28 = vector.broadcast %c0_i32 : i32 to vector<1x128xi32>
    %29 = arith.cmpi sge, %15, %28 : vector<1x128xi32>
    %c128_i32_16 = arith.constant 128 : i32
    %30 = vector.broadcast %c128_i32_16 : i32 to vector<1x128xi32>
    %31 = arith.cmpi slt, %15, %30 : vector<1x128xi32>
    %32 = arith.andi %29, %31 : vector<1x128xi1>
    %33 = vector.extract_strided_slice %6 {offsets = [0, 1], sizes = [16, 1], strides = [1, 1]} : vector<16x3xf32> to vector<16x1xf32>
    %cst_17 = arith.constant 0.000000e+00 : f32
    %34 = vector.shape_cast %32 : vector<1x128xi1> to vector<1x128xi1>
    %35 = vector.broadcast %34 : vector<1x128xi1> to vector<16x128xi1>
    %36 = vector.shape_cast %33 : vector<16x1xf32> to vector<16x1xf32>
    %37 = vector.broadcast %36 : vector<16x1xf32> to vector<16x128xf32>
    %38 = vector.broadcast %cst_17 : f32 to vector<16x128xf32>
    %39 = arith.select %35, %37, %38 : vector<16x128xi1>, vector<16x128xf32>
    %c0_i32_18 = arith.constant 0 : i32
    %40 = vector.broadcast %c0_i32_18 : i32 to vector<1x128xi32>
    %41 = arith.cmpi sge, %15, %40 : vector<1x128xi32>
    %c127_i32 = arith.constant 127 : i32
    %42 = vector.broadcast %c127_i32 : i32 to vector<1x128xi32>
    %43 = arith.cmpi slt, %15, %42 : vector<1x128xi32>
    %44 = arith.andi %41, %43 : vector<1x128xi1>
    %45 = vector.extract_strided_slice %6 {offsets = [0, 2], sizes = [16, 1], strides = [1, 1]} : vector<16x3xf32> to vector<16x1xf32>
    %cst_19 = arith.constant 0.000000e+00 : f32
    %46 = vector.shape_cast %44 : vector<1x128xi1> to vector<1x128xi1>
    %47 = vector.broadcast %46 : vector<1x128xi1> to vector<16x128xi1>
    %48 = vector.shape_cast %45 : vector<16x1xf32> to vector<16x1xf32>
    %49 = vector.broadcast %48 : vector<16x1xf32> to vector<16x128xf32>
    %50 = vector.broadcast %cst_19 : f32 to vector<16x128xf32>
    %51 = arith.select %47, %49, %50 : vector<16x128xi1>, vector<16x128xf32>
    %c0_20 = arith.constant 0 : index
    %c0_21 = arith.constant 0 : index
    %52 = vector.load %arg9[%c0_20, %c0_21] : memref<8x16xf32, #tpu.memory_space<vmem>>, vector<8x16xf32>
    %cst_22 = arith.constant dense<0.000000e+00> : vector<8x1xf32>
    %53 = tpu.matmul %52, %5, %cst_22 {dimension_numbers = #tpu.dot_dimension_numbers<[1], [0], [0], [1], [0, 0, 1, 1], [], []>} : vector<8x16xf32>, vector<16x1xf32>, vector<8x1xf32> -> vector<8x1xf32>
    %cst_23 = arith.constant dense<0.000000e+00> : vector<8x1xf32>
    %54 = tpu.matmul %52, %4, %cst_23 {dimension_numbers = #tpu.dot_dimension_numbers<[1], [0], [0], [1], [0, 0, 1, 1], [], []>} : vector<8x16xf32>, vector<16x1xf32>, vector<8x1xf32> -> vector<8x1xf32>
    %55 = vector.shape_cast %14 : vector<16x128xf32> to vector<1x16x128xf32>
    %cst_24 = arith.constant dense<0.000000e+00> : vector<1xf32>
    %56 = vector.multi_reduction <add>, %55, %cst_24 [1, 2] : vector<1x16x128xf32> to vector<1xf32>
    %57 = vector.shape_cast %56 : vector<1xf32> to vector<1x1x1xf32>
    %58 = vector.extract %57[0, 0, 0] : f32 from vector<1x1x1xf32>
    %cst_25 = arith.constant 4.8828125E-4 : f32
    %59 = arith.mulf %58, %cst_25 : f32
    %60 = vector.broadcast %59 : f32 to vector<16x128xf32>
    %61 = arith.subf %14, %60 : vector<16x128xf32>
    %62 = arith.mulf %61, %61 : vector<16x128xf32>
    %63 = vector.shape_cast %62 : vector<16x128xf32> to vector<1x16x128xf32>
    %cst_26 = arith.constant dense<0.000000e+00> : vector<1xf32>
    %64 = vector.multi_reduction <add>, %63, %cst_26 [1, 2] : vector<1x16x128xf32> to vector<1xf32>
    %65 = vector.shape_cast %64 : vector<1xf32> to vector<1x1x1xf32>
    %66 = vector.extract %65[0, 0, 0] : f32 from vector<1x1x1xf32>
    %cst_27 = arith.constant 4.8828125E-4 : f32
    %67 = arith.mulf %66, %cst_27 : f32
    %cst_28 = arith.constant 9.99999993E-9 : f32
    %68 = arith.addf %67, %cst_28 : f32
    %69 = math.rsqrt %68 : f32
    %70 = vector.broadcast %69 : f32 to vector<16x1xf32>
    %71 = arith.mulf %2, %70 : vector<16x1xf32>
    %72 = vector.broadcast %59 : f32 to vector<16x1xf32>
    %73 = arith.mulf %72, %71 : vector<16x1xf32>
    %74 = arith.subf %3, %73 : vector<16x1xf32>
    %75 = vector.broadcast %71 : vector<16x1xf32> to vector<16x128xf32>
    %76 = arith.mulf %14, %75 : vector<16x128xf32>
    %77 = vector.broadcast %74 : vector<16x1xf32> to vector<16x128xf32>
    %78 = arith.addf %76, %77 : vector<16x128xf32>
    %c1_i32_29 = arith.constant 1 : i32
    %79 = tpu.dynamic_rotate %78 by %c1_i32_29 dim 1 : vector<16x128xf32>, i32 -> vector<16x128xf32>
    %80 = arith.mulf %27, %79 : vector<16x128xf32>
    %81 = arith.mulf %39, %78 : vector<16x128xf32>
    %82 = arith.addf %80, %81 : vector<16x128xf32>
    %c127_i32_30 = arith.constant 127 : i32
    %83 = tpu.dynamic_rotate %78 by %c127_i32_30 dim 1 : vector<16x128xf32>, i32 -> vector<16x128xf32>
    %84 = arith.mulf %51, %83 : vector<16x128xf32>
    %85 = arith.addf %82, %84 : vector<16x128xf32>
    %cst_31 = arith.constant 0.000000e+00 : f32
    %86 = vector.broadcast %cst_31 : f32 to vector<16x128xf32>
    %87 = arith.cmpf ogt, %85, %86 : vector<16x128xf32>
    %88 = vector.broadcast %1 : f32 to vector<16x128xf32>
    %89 = arith.mulf %88, %85 : vector<16x128xf32>
    %90 = arith.select %87, %85, %89 : vector<16x128xi1>, vector<16x128xf32>
    %91 = vector.shape_cast %90 : vector<16x128xf32> to vector<1x16x128xf32>
    %cst_32 = arith.constant dense<0.000000e+00> : vector<1xf32>
    %92 = vector.multi_reduction <add>, %91, %cst_32 [1, 2] : vector<1x16x128xf32> to vector<1xf32>
    %93 = vector.shape_cast %92 : vector<1xf32> to vector<1x1x1xf32>
    %94 = vector.extract %93[0, 0, 0] : f32 from vector<1x1x1xf32>
    %cst_33 = arith.constant 4.8828125E-4 : f32
    %95 = arith.mulf %94, %cst_33 : f32
    %96 = vector.broadcast %95 : f32 to vector<16x128xf32>
    %97 = arith.subf %90, %96 : vector<16x128xf32>
    %98 = arith.mulf %97, %97 : vector<16x128xf32>
    %99 = vector.shape_cast %98 : vector<16x128xf32> to vector<1x16x128xf32>
    %cst_34 = arith.constant dense<0.000000e+00> : vector<1xf32>
    %100 = vector.multi_reduction <add>, %99, %cst_34 [1, 2] : vector<1x16x128xf32> to vector<1xf32>
    %101 = vector.shape_cast %100 : vector<1xf32> to vector<1x1x1xf32>
    %102 = vector.extract %101[0, 0, 0] : f32 from vector<1x1x1xf32>
    %cst_35 = arith.constant 4.8828125E-4 : f32
    %103 = arith.mulf %102, %cst_35 : f32
    %cst_36 = arith.constant 9.99999993E-9 : f32
    %104 = arith.addf %103, %cst_36 : f32
    %105 = math.rsqrt %104 : f32
    %106 = vector.broadcast %105 : f32 to vector<16x1xf32>
    %107 = arith.mulf %4, %106 : vector<16x1xf32>
    %108 = vector.broadcast %107 : vector<16x1xf32> to vector<16x128xf32>
    %109 = arith.mulf %90, %108 : vector<16x128xf32>
    %c0_37 = arith.constant 0 : index
    %c0_38 = arith.constant 0 : index
    %110 = vector.load %arg11[%c0_37, %c0_38] : memref<16x128xf32, #tpu.memory_space<vmem>>, vector<16x128xf32>
    tpu.vector_store %arg11[%c0_37, %c0_38], %109 {strides = array<i32>} : memref<16x128xf32, #tpu.memory_space<vmem>>, vector<16x128xf32>,
    %111 = arith.mulf %95, %105 : f32
    %112 = vector.broadcast %111 : f32 to vector<8x1xf32>
    %113 = arith.mulf %112, %54 : vector<8x1xf32>
    %114 = arith.subf %53, %113 : vector<8x1xf32>
    %c0_39 = arith.constant 0 : index
    %c0_40 = arith.constant 0 : index
    %115 = vector.load %arg9[%c0_39, %c0_40] : memref<8x16xf32, #tpu.memory_space<vmem>>, vector<8x16xf32>
    %c0_41 = arith.constant 0 : index
    %c0_42 = arith.constant 0 : index
    %116 = vector.load %arg11[%c0_41, %c0_42] : memref<16x128xf32, #tpu.memory_space<vmem>>, vector<16x128xf32>
    %cst_43 = arith.constant dense<0.000000e+00> : vector<8x128xf32>
    %117 = tpu.matmul %115, %116, %cst_43 {dimension_numbers = #tpu.dot_dimension_numbers<[1], [0], [0], [1], [0, 0, 1, 1], [], []>} : vector<8x16xf32>, vector<16x128xf32>, vector<8x128xf32> -> vector<8x128xf32>
    %c0_44 = arith.constant 0 : index
    %c0_45 = arith.constant 0 : index
    %118 = vector.load %arg2[%c0_44, %c0_45] : memref<8x128xf32, #tpu.memory_space<vmem>>, vector<8x128xf32>
    %119 = vector.broadcast %114 : vector<8x1xf32> to vector<8x128xf32>
    %120 = arith.addf %117, %119 : vector<8x128xf32>
    %121 = arith.addf %120, %118 : vector<8x128xf32>
    %c0_46 = arith.constant 0 : index
    %c0_47 = arith.constant 0 : index
    %122 = vector.load %arg10[%c0_46, %c0_47] : memref<8x128xf32, #tpu.memory_space<vmem>>, vector<8x128xf32>
    tpu.vector_store %arg10[%c0_46, %c0_47], %121 {strides = array<i32>} : memref<8x128xf32, #tpu.memory_space<vmem>>, vector<8x128xf32>,
    return
  }
  func.func @transform_0(%arg0: i32) -> i32 {
    %c0_i32 = arith.constant 0 : i32
    %c0_i32_0 = arith.constant 0 : i32
    return %c0_i32 : i32
  }
  func.func @transform_1(%arg0: i32) -> (i32, i32) {
    %c0_i32 = arith.constant 0 : i32
    %c0_i32_0 = arith.constant 0 : i32
    return %c0_i32, %arg0 : i32, i32
  }
  func.func @transform_2(%arg0: i32) -> (i32, i32) {
    %c0_i32 = arith.constant 0 : i32
    %c0_i32_0 = arith.constant 0 : i32
    %c0_i32_1 = arith.constant 0 : i32
    return %c0_i32, %c0_i32_0 : i32, i32
  }
  func.func @transform_3(%arg0: i32) -> (i32, i32) {
    %c0_i32 = arith.constant 0 : i32
    %c0_i32_0 = arith.constant 0 : i32
    %c0_i32_1 = arith.constant 0 : i32
    return %c0_i32, %c0_i32_0 : i32, i32
  }
  func.func @transform_4(%arg0: i32) -> (i32, i32) {
    %c0_i32 = arith.constant 0 : i32
    %c0_i32_0 = arith.constant 0 : i32
    %c0_i32_1 = arith.constant 0 : i32
    return %c0_i32, %c0_i32_0 : i32, i32
  }
  func.func @transform_5(%arg0: i32) -> (i32, i32) {
    %c0_i32 = arith.constant 0 : i32
    %c0_i32_0 = arith.constant 0 : i32
    %c0_i32_1 = arith.constant 0 : i32
    return %c0_i32, %c0_i32_0 : i32, i32
  }
  func.func @transform_6(%arg0: i32) -> (i32, i32) {
    %c0_i32 = arith.constant 0 : i32
    %c0_i32_0 = arith.constant 0 : i32
    %c0_i32_1 = arith.constant 0 : i32
    return %c0_i32, %c0_i32_0 : i32, i32
  }
  func.func @transform_7(%arg0: i32) -> (i32, i32) {
    %c0_i32 = arith.constant 0 : i32
    %c0_i32_0 = arith.constant 0 : i32
    %c0_i32_1 = arith.constant 0 : i32
    return %c0_i32, %c0_i32_0 : i32, i32
  }
  func.func @transform_8(%arg0: i32) -> (i32, i32) {
    %c0_i32 = arith.constant 0 : i32
    %c0_i32_0 = arith.constant 0 : i32
    %c0_i32_1 = arith.constant 0 : i32
    return %c0_i32, %c0_i32_0 : i32, i32
  }
  func.func @transform_9(%arg0: i32) -> (i32, i32) {
    %c0_i32 = arith.constant 0 : i32
    %c0_i32_0 = arith.constant 0 : i32
    return %c0_i32, %arg0 : i32, i32
  }
}

</mosaic_0001>

<llo_original>
// kernel: tpu_custom_call.1
$region0: #{tpu_custom_call.1}
  #allocation0 [shape = 'u32[]', space=smem, size = 0x4, offset = 0x4, fixed_abs, tag = 'smem constant byte address 0x4 - core index']
  #allocation1 [shape = 'u32[144,128]{1,0:T(1,128)}', space=vmem, size = 0x12000, scoped, tag = 'internal scratch']
  #allocation2 [shape = 'f32[16,128]{1,0:T(8,128)}', space=vmem, size = 0x2000, scoped, tag = 'scratch operand']
  %s0 = inlined_call_operand.vmem [shape: f32[2], index: 0, kind: input, shape index: {}]
  %s1 = inlined_call_operand.vmem [shape: f32[8,256], index: 1, kind: input, shape index: {}]
  %s2 = inlined_call_operand.vmem [shape: f32[16,8], index: 2, kind: input, shape index: {}]
  %s3 = inlined_call_operand.vmem [shape: f32[16,1], index: 3, kind: input, shape index: {}]
  %s4 = inlined_call_operand.vmem [shape: f32[16,1], index: 4, kind: input, shape index: {}]
  %s5 = inlined_call_operand.vmem [shape: f32[16,3], index: 5, kind: input, shape index: {}]
  %s6 = inlined_call_operand.vmem [shape: f32[16,1], index: 6, kind: input, shape index: {}]
  %s7 = inlined_call_operand.vmem [shape: f32[16,1], index: 7, kind: input, shape index: {}]
  %s8 = inlined_call_operand.vmem [shape: f32[8,16], index: 8, kind: input, shape index: {}]
  %s9 = inlined_call_operand.hbm [shape: f32[8,256], index: 9, kind: output, shape index: {}]
  %s10 = sld [smem:[#allocation0]]
  $region73: #{tpu_custom_call.1} parent=0
    _
  %s12 = ssub.s32 1, %s10
  %s13 = scalar_select 0, %s12, %s10
  $region1: #{tpu_custom_call.1} parent=0
    #allocation3 [shape = 'u8[512]{0}', space=smem, size = 0x200, scoped, tag = 'input window, operand 0, single buffered']
    #allocation4 [shape = 's32[2]{0}', space=sflag, size = 0x8, scoped, tag = 'scoped memory for tpu_custom_call.1']
    #allocation5 [shape = 's32[2]{0}', space=sflag, size = 0x8, scoped, tag = 'scoped memory for tpu_custom_call.1']
    #allocation6 [shape = 'u8[8192]{0}', space=vmem, size = 0x2000, scoped, tag = 'output window, operand 0']
    %14 = vsyncpa [#allocation5], 0
    %15 = vsyncpa [#allocation4], 0
    %s16 = scalar_lea.sflag [#allocation4], 1
    %17 = vsyncpa %s16, 0
    loop: start=0, step=1, limit=4
    $region2: #{tpu_custom_call.1} parent=1 // loop_pre_header
      _
    $region3: #{tpu_custom_call.1} parent=1 // loop_header
      %s19 = sphi 0, %s23
      %p20 = scmp.ge.s32.totalorder %s19, 4
      %s27 = sphi 0, %s27
      %s29 = sphi 0, %s27
      %s30 = sphi 0, %s29
      %s44 = sphi 0, %s30
      %s50 = sphi 0, %s52
      %s53 = sphi 0, %s50
      %s54 = sphi 0, %s53
      %s70 = sphi 0, %s54
      %s74 = sphi 0, %s74
      %s76 = sphi 0, %s74
      %s77 = sphi 0, %s76
      %s91 = sphi 0, %s77
      %s95 = sphi 0, %s95
      %s97 = sphi 0, %s95
      %s98 = sphi 0, %s97
      %s112 = sphi 0, %s98
      %s116 = sphi 0, %s116
      %s118 = sphi 0, %s116
      %s119 = sphi 0, %s118
      %s133 = sphi 0, %s119
      %s137 = sphi 0, %s137
      %s139 = sphi 0, %s137
      %s140 = sphi 0, %s139
      %s154 = sphi 0, %s140
      %s158 = sphi 0, %s158
      %s160 = sphi 0, %s158
      %s161 = sphi 0, %s160
      %s175 = sphi 0, %s161
      %s179 = sphi 0, %s179
      %s181 = sphi 0, %s179
      %s182 = sphi 0, %s181
      %s196 = sphi 0, %s182
      %s200 = sphi 0, %s200
      %s202 = sphi 0, %s200
      %s203 = sphi 0, %s202
      %s217 = sphi 0, %s203
      %s223 = sphi 0, %s225
      %s226 = sphi 0, %s223
      %s227 = sphi 0, %s226
      %s243 = sphi 0, %s227
    $region4: #{tpu_custom_call.1} parent=1 // loop_header_branch
      %22 = sbr.rel (%p20) target = $region8
    $region5: #{tpu_custom_call.1} parent=1 // loop_body
      %s24 = ssub.s32 %s19, 1
      %s25 = ssub.s32 %s19, 2
      %s26 = sadd.s32 %s19, 1
      %s28 = sadd.s32 %s27, 1
      %p31 = scmp.eq.s32.totalorder %s19, 1
      %p32 = scmp.ne.s32.totalorder %s27, %s29
      %p33 = scmp.eq.s32.totalorder %s19, 0
      %p34 = por %p32, %p33
      %p35 = scmp.ne.s32.totalorder %s27, %s29
      %p36 = scmp.eq.s32.totalorder %s24, 1
      %p37 = por %p35, %p36
      %p38 = scmp.ne.s32.totalorder %s29, %s30
      %p39 = scmp.eq.s32.totalorder %s24, 0
      %p40 = por %p38, %p39
      %p41 = scmp.ne.s32.totalorder %s29, %s30
      %p42 = scmp.eq.s32.totalorder %s25, 1
      %p43 = por %p41, %p42
      %p45 = scmp.ne.s32.totalorder %s30, %s44
      %p46 = scmp.eq.s32.totalorder %s25, 0
      %p47 = por %p45, %p46
      %s48 = ssub.s32 %s19, %s26
      %p49 = scmp.eq.s32.totalorder %s48, 0
      %s51 = sadd.s32 %s50, 1
      %s52 = scalar_select %p49, %s50, %s51
      %p55 = pneg %p49
      %p56 = scmp.eq.s32.totalorder %s19, 1
      %p57 = por %p55, %p56
      %p58 = scmp.ne.s32.totalorder %s50, %s53
      %p59 = scmp.eq.s32.totalorder %s19, 0
      %p60 = por %p58, %p59
      %p61 = scmp.ne.s32.totalorder %s50, %s53
      %p62 = scmp.eq.s32.totalorder %s24, 1
      %p63 = por %p61, %p62
      %p64 = scmp.ne.s32.totalorder %s53, %s54
      %p65 = scmp.eq.s32.totalorder %s24, 0
      %p66 = por %p64, %p65
      %p67 = scmp.ne.s32.totalorder %s53, %s54
      %p68 = scmp.eq.s32.totalorder %s25, 1
      %p69 = por %p67, %p68
      %p71 = scmp.ne.s32.totalorder %s54, %s70
      %p72 = scmp.eq.s32.totalorder %s25, 0
      %p73 = por %p71, %p72
      %s75 = sadd.s32 %s74, 1
      %p78 = scmp.eq.s32.totalorder %s19, 1
      %p79 = scmp.ne.s32.totalorder %s74, %s76
      %p80 = scmp.eq.s32.totalorder %s19, 0
      %p81 = por %p79, %p80
      %p82 = scmp.ne.s32.totalorder %s74, %s76
      %p83 = scmp.eq.s32.totalorder %s24, 1
      %p84 = por %p82, %p83
      %p85 = scmp.ne.s32.totalorder %s76, %s77
      %p86 = scmp.eq.s32.totalorder %s24, 0
      %p87 = por %p85, %p86
      %p88 = scmp.ne.s32.totalorder %s76, %s77
      %p89 = scmp.eq.s32.totalorder %s25, 1
      %p90 = por %p88, %p89
      %p92 = scmp.ne.s32.totalorder %s77, %s91
      %p93 = scmp.eq.s32.totalorder %s25, 0
      %p94 = por %p92, %p93
      %s96 = sadd.s32 %s95, 1
      %p99 = scmp.eq.s32.totalorder %s19, 1
      %p100 = scmp.ne.s32.totalorder %s95, %s97
      %p101 = scmp.eq.s32.totalorder %s19, 0
      %p102 = por %p100, %p101
      %p103 = scmp.ne.s32.totalorder %s95, %s97
      %p104 = scmp.eq.s32.totalorder %s24, 1
      %p105 = por %p103, %p104
      %p106 = scmp.ne.s32.totalorder %s97, %s98
      %p107 = scmp.eq.s32.totalorder %s24, 0
      %p108 = por %p106, %p107
      %p109 = scmp.ne.s32.totalorder %s97, %s98
      %p110 = scmp.eq.s32.totalorder %s25, 1
      %p111 = por %p109, %p110
      %p113 = scmp.ne.s32.totalorder %s98, %s112
      %p114 = scmp.eq.s32.totalorder %s25, 0
      %p115 = por %p113, %p114
      %s117 = sadd.s32 %s116, 1
      %p120 = scmp.eq.s32.totalorder %s19, 1
      %p121 = scmp.ne.s32.totalorder %s116, %s118
      %p122 = scmp.eq.s32.totalorder %s19, 0
      %p123 = por %p121, %p122
      %p124 = scmp.ne.s32.totalorder %s116, %s118
      %p125 = scmp.eq.s32.totalorder %s24, 1
      %p126 = por %p124, %p125
      %p127 = scmp.ne.s32.totalorder %s118, %s119
      %p128 = scmp.eq.s32.totalorder %s24, 0
      %p129 = por %p127, %p128
      %p130 = scmp.ne.s32.totalorder %s118, %s119
      %p131 = scmp.eq.s32.totalorder %s25, 1
      %p132 = por %p130, %p131
      %p134 = scmp.ne.s32.totalorder %s119, %s133
      %p135 = scmp.eq.s32.totalorder %s25, 0
      %p136 = por %p134, %p135
      %s138 = sadd.s32 %s137, 1
      %p141 = scmp.eq.s32.totalorder %s19, 1
      %p142 = scmp.ne.s32.totalorder %s137, %s139
      %p143 = scmp.eq.s32.totalorder %s19, 0
      %p144 = por %p142, %p143
      %p145 = scmp.ne.s32.totalorder %s137, %s139
      %p146 = scmp.eq.s32.totalorder %s24, 1
      %p147 = por %p145, %p146
      %p148 = scmp.ne.s32.totalorder %s139, %s140
      %p149 = scmp.eq.s32.totalorder %s24, 0
      %p150 = por %p148, %p149
      %p151 = scmp.ne.s32.totalorder %s139, %s140
      %p152 = scmp.eq.s32.totalorder %s25, 1
      %p153 = por %p151, %p152
      %p155 = scmp.ne.s32.totalorder %s140, %s154
      %p156 = scmp.eq.s32.totalorder %s25, 0
      %p157 = por %p155, %p156
      %s159 = sadd.s32 %s158, 1
      %p162 = scmp.eq.s32.totalorder %s19, 1
      %p163 = scmp.ne.s32.totalorder %s158, %s160
      %p164 = scmp.eq.s32.totalorder %s19, 0
      %p165 = por %p163, %p164
      %p166 = scmp.ne.s32.totalorder %s158, %s160
      %p167 = scmp.eq.s32.totalorder %s24, 1
      %p168 = por %p166, %p167
      %p169 = scmp.ne.s32.totalorder %s160, %s161
      %p170 = scmp.eq.s32.totalorder %s24, 0
      %p171 = por %p169, %p170
      %p172 = scmp.ne.s32.totalorder %s160, %s161
      %p173 = scmp.eq.s32.totalorder %s25, 1
      %p174 = por %p172, %p173
      %p176 = scmp.ne.s32.totalorder %s161, %s175
      %p177 = scmp.eq.s32.totalorder %s25, 0
      %p178 = por %p176, %p177
      %s180 = sadd.s32 %s179, 1
      %p183 = scmp.eq.s32.totalorder %s19, 1
      %p184 = scmp.ne.s32.totalorder %s179, %s181
      %p185 = scmp.eq.s32.totalorder %s19, 0
      %p186 = por %p184, %p185
      %p187 = scmp.ne.s32.totalorder %s179, %s181
      %p188 = scmp.eq.s32.totalorder %s24, 1
      %p189 = por %p187, %p188
      %p190 = scmp.ne.s32.totalorder %s181, %s182
      %p191 = scmp.eq.s32.totalorder %s24, 0
      %p192 = por %p190, %p191
      %p193 = scmp.ne.s32.totalorder %s181, %s182
      %p194 = scmp.eq.s32.totalorder %s25, 1
      %p195 = por %p193, %p194
      %p197 = scmp.ne.s32.totalorder %s182, %s196
      %p198 = scmp.eq.s32.totalorder %s25, 0
      %p199 = por %p197, %p198
      %s201 = sadd.s32 %s200, 1
      %p204 = scmp.eq.s32.totalorder %s19, 1
      %p205 = scmp.ne.s32.totalorder %s200, %s202
      %p206 = scmp.eq.s32.totalorder %s19, 0
      %p207 = por %p205, %p206
      %p208 = scmp.ne.s32.totalorder %s200, %s202
      %p209 = scmp.eq.s32.totalorder %s24, 1
      %p210 = por %p208, %p209
      %p211 = scmp.ne.s32.totalorder %s202, %s203
      %p212 = scmp.eq.s32.totalorder %s24, 0
      %p213 = por %p211, %p212
      %p214 = scmp.ne.s32.totalorder %s202, %s203
      %p215 = scmp.eq.s32.totalorder %s25, 1
      %p216 = por %p214, %p215
      %p218 = scmp.ne.s32.totalorder %s203, %s217
      %p219 = scmp.eq.s32.totalorder %s25, 0
      %p220 = por %p218, %p219
      %s221 = ssub.s32 %s19, %s26
      %p222 = scmp.eq.s32.totalorder %s221, 0
      %s224 = sadd.s32 %s223, 1
      %s225 = scalar_select %p222, %s223, %s224
      %p228 = pneg %p222
      %p229 = scmp.eq.s32.totalorder %s19, 1
      %p230 = por %p228, %p229
      %p231 = scmp.ne.s32.totalorder %s223, %s226
      %p232 = scmp.eq.s32.totalorder %s19, 0
      %p233 = por %p231, %p232
      %p234 = scmp.ne.s32.totalorder %s223, %s226
      %p235 = scmp.eq.s32.totalorder %s24, 1
      %p236 = por %p234, %p235
      %p237 = scmp.ne.s32.totalorder %s226, %s227
      %p238 = scmp.eq.s32.totalorder %s24, 0
      %p239 = por %p237, %p238
      %p240 = scmp.ne.s32.totalorder %s226, %s227
      %p241 = scmp.eq.s32.totalorder %s25, 1
      %p242 = por %p240, %p241
      %p244 = scmp.ne.s32.totalorder %s227, %s243
      %p245 = scmp.eq.s32.totalorder %s25, 0
      %p246 = por %p244, %p245
      %p247 = scmp.le.s32.totalorder 1, %s19
      %p248 = scmp.lt.s32.totalorder %s19, 3
      %p249 = pnand %p247, %p248
      %p250 = pneg %p249
      // Predicated region
      $region9: #{tpu_custom_call.1} parent=5 // pred_check
        _
      $region10: #{tpu_custom_call.1} parent=5 // pred_check_branch
        %252 = sbr.rel (%p249) target = $region12
      $region11: #{tpu_custom_call.1} parent=5 // pred_region
        %s253 = ssub.s32 %s19, 1
        // Predicated region
        $region13: #{tpu_custom_call.1} parent=11 // pred_check
          %p254 = pneg %p40
        $region14: #{tpu_custom_call.1} parent=11 // pred_check_branch
          %256 = sbr.rel (%p254) target = $region16
        $region15: #{tpu_custom_call.1} parent=11 // pred_region
          %s258 = ssub.s32 16, 16
          %259 = vsyncadd [#allocation5], %s258
          %s261 = sshll.u32 %s0, 4
          %s262 = int_to_ptr.vmem [resolvable:$true] %s261
          %264 = dma.vmem_to_smem %s262, 16, [#allocation3], [#allocation5]
        $region16: #{tpu_custom_call.1} parent=11 // pred_fallthru
          _
        // Predicated region
        $region17: #{tpu_custom_call.1} parent=11 // pred_check
          %p265 = pneg %p87
        $region18: #{tpu_custom_call.1} parent=11 // pred_check_branch
          %267 = sbr.rel (%p265) target = $region20
        $region19: #{tpu_custom_call.1} parent=11 // pred_region
          _
        $region20: #{tpu_custom_call.1} parent=11 // pred_fallthru
          _
        // Predicated region
        $region21: #{tpu_custom_call.1} parent=11 // pred_check
          %p268 = pneg %p108
        $region22: #{tpu_custom_call.1} parent=11 // pred_check_branch
          %270 = sbr.rel (%p268) target = $region24
        $region23: #{tpu_custom_call.1} parent=11 // pred_region
          _
        $region24: #{tpu_custom_call.1} parent=11 // pred_fallthru
          _
        // Predicated region
        $region25: #{tpu_custom_call.1} parent=11 // pred_check
          %p271 = pneg %p129
        $region26: #{tpu_custom_call.1} parent=11 // pred_check_branch
          %273 = sbr.rel (%p271) target = $region28
        $region27: #{tpu_custom_call.1} parent=11 // pred_region
          _
        $region28: #{tpu_custom_call.1} parent=11 // pred_fallthru
          _
        // Predicated region
        $region29: #{tpu_custom_call.1} parent=11 // pred_check
          %p274 = pneg %p150
        $region30: #{tpu_custom_call.1} parent=11 // pred_check_branch
          %276 = sbr.rel (%p274) target = $region32
        $region31: #{tpu_custom_call.1} parent=11 // pred_region
          _
        $region32: #{tpu_custom_call.1} parent=11 // pred_fallthru
          _
        // Predicated region
        $region33: #{tpu_custom_call.1} parent=11 // pred_check
          %p277 = pneg %p171
        $region34: #{tpu_custom_call.1} parent=11 // pred_check_branch
          %279 = sbr.rel (%p277) target = $region36
        $region35: #{tpu_custom_call.1} parent=11 // pred_region
          _
        $region36: #{tpu_custom_call.1} parent=11 // pred_fallthru
          _
        // Predicated region
        $region37: #{tpu_custom_call.1} parent=11 // pred_check
          %p280 = pneg %p192
        $region38: #{tpu_custom_call.1} parent=11 // pred_check_branch
          %282 = sbr.rel (%p280) target = $region40
        $region39: #{tpu_custom_call.1} parent=11 // pred_region
          _
        $region40: #{tpu_custom_call.1} parent=11 // pred_fallthru
          _
        // Predicated region
        $region41: #{tpu_custom_call.1} parent=11 // pred_check
          %p283 = pneg %p213
        $region42: #{tpu_custom_call.1} parent=11 // pred_check_branch
          %285 = sbr.rel (%p283) target = $region44
        $region43: #{tpu_custom_call.1} parent=11 // pred_region
          _
        $region44: #{tpu_custom_call.1} parent=11 // pred_fallthru
          _
      $region12: #{tpu_custom_call.1} parent=5 // pred_fallthru
        _
      %p286 = scmp.lt.s32.totalorder %s19, 2
      // Predicated region
      $region45: #{tpu_custom_call.1} parent=5 // pred_check
        %p287 = pneg %p286
      $region46: #{tpu_custom_call.1} parent=5 // pred_check_branch
        %289 = sbr.rel (%p287) target = $region48
      $region47: #{tpu_custom_call.1} parent=5 // pred_region
        // Predicated region
        $region49: #{tpu_custom_call.1} parent=47 // pred_check
          %p290 = pneg %p60
        $region50: #{tpu_custom_call.1} parent=47 // pred_check_branch
          %292 = sbr.rel (%p290) target = $region52
        $region51: #{tpu_custom_call.1} parent=47 // pred_region
          %p293 = scmp.lt.s32.totalorder %s19, 1
          %s294 = scalar_select %p293, %s19, 1
          %s295 = smul.addr %s294, 8
          %s296 = scalar_lea.vmem %s1, %s295
        $region52: #{tpu_custom_call.1} parent=47 // pred_fallthru
          _
      $region48: #{tpu_custom_call.1} parent=5 // pred_fallthru
        _
      %p297 = scmp.le.s32.totalorder 1, %s19
      %p298 = scmp.lt.s32.totalorder %s19, 3
      %p299 = pnand %p297, %p298
      %p300 = pneg %p299
      // Predicated region
      $region53: #{tpu_custom_call.1} parent=5 // pred_check
        _
      $region54: #{tpu_custom_call.1} parent=5 // pred_check_branch
        %302 = sbr.rel (%p299) target = $region56
      $region55: #{tpu_custom_call.1} parent=5 // pred_region
        %s303 = ssub.s32 %s19, 1
        // Predicated region
        $region57: #{tpu_custom_call.1} parent=55 // pred_check
          %p304 = pneg %p40
        $region58: #{tpu_custom_call.1} parent=55 // pred_check_branch
          %306 = sbr.rel (%p304) target = $region60
        $region59: #{tpu_custom_call.1} parent=55 // pred_region
          %307 = dma.done [#allocation5], 16
        $region60: #{tpu_custom_call.1} parent=55 // pred_fallthru
          _
        %308 = sfence
        %p309 = pneg %p40
        %p310 = pneg %p37
        %p311 = scmp.lt.s32.totalorder %s24, 1
        %s312 = scalar_select %p311, %s24, 1
        %s313 = smul.addr %s312, 8
        %s314 = scalar_lea.vmem %s1, %s313
        %p315 = pneg %p66
        %p316 = pneg %p63
        %p317 = pneg %p87
        %p318 = pneg %p84
        %p319 = pneg %p108
        %p320 = pneg %p105
        %p321 = pneg %p129
        %p322 = pneg %p126
        %p323 = pneg %p150
        %p324 = pneg %p147
        %p325 = pneg %p171
        %p326 = pneg %p168
        %p327 = pneg %p192
        %p328 = pneg %p189
        %p329 = pneg %p213
        %p330 = pneg %p210
        %p331 = pneg %p239
        %p332 = pneg %p236
        %s333 = sand.u32 %s226, 1
        %s334 = scalar_lea.sflag [#allocation4], %s333
        %s335 = sand.u32 %s226, 1
        %s336 = smul.addr %s335, 8
        %s337 = scalar_lea.vmem [#allocation6], %s336
        %p338 = scmp.lt.s32.totalorder %s24, 1
        %s339 = scalar_select %p338, %s24, 1
        %s340 = smul.addr %s339, 8
        %s341 = scalar_lea.vmem %s1, %s340
        %s342 = sld [smem:[#allocation3]]
        %s343 = sld [smem:[#allocation3 + $0x1]]
        %v344 = vld [vmem:[%s3] sm:$0xff]
        %v345 = vld [vmem:[%s3 + $0x8] sm:$0xff]
        %v346 = vld [vmem:[%s4] sm:$0xff]
        %v347 = vld [vmem:[%s4 + $0x8] sm:$0xff]
        %v348 = vld [vmem:[%s6] sm:$0xff]
        %v349 = vld [vmem:[%s6 + $0x8] sm:$0xff]
        %v350 = vld [vmem:[%s7] sm:$0xff]
        %v351 = vld [vmem:[%s7 + $0x8] sm:$0xff]
        %v352 = vld [vmem:[%s5] sm:$0xff]
        %v353 = vld [vmem:[%s5 + $0x8] sm:$0xff]
        %v354 = vld [vmem:[%s2] sm:$0xff]
        %v355 = vld [vmem:[%s2 + $0x8] sm:$0xff]
        %v356 = vld [vmem:[%s341] sm:$0xff]
        %vm357 = vcmask 64512
        %v359 = vsel %vm357, %v354, 0
        %v362 = vsel %vm357, %v355, 0
        %364 = vmatprep.subr.mxu0 0.0
        %365 = vmatpush1.msra.mxu0 %v356
        %366 = vmatprep.subr.mxu0 0.0
        %367 = vmatpush1.msra.mxu0 0.0
        %368 = vmatprep.subr.mxu0 0.0
        %369 = vmatpush1.msra.mxu0 0.0
        %370 = vmatprep.subr.mxu0 0.0
        %371 = vmatpush1.msra.mxu0 0.0
        %372 = vmatprep.subr.mxu0 0.0
        %373 = vmatpush1.msra.mxu0 0.0
        %374 = vmatprep.subr.mxu0 0.0
        %375 = vmatpush1.msra.mxu0 0.0
        %376 = vmatprep.subr.mxu0 0.0
        %377 = vmatpush1.msra.mxu0 0.0
        %378 = vmatprep.subr.mxu0 0.0
        %379 = vmatpush1.msra.mxu0 0.0
        %380 = vmatprep.subr.mxu0 0.0
        %381 = vmatpush1.msra.mxu0 0.0
        %382 = vmatprep.subr.mxu0 0.0
        %383 = vmatpush1.msra.mxu0 0.0
        %384 = vmatprep.subr.mxu0 0.0
        %385 = vmatpush1.msra.mxu0 0.0
        %386 = vmatprep.subr.mxu0 0.0
        %387 = vmatpush1.msra.mxu0 0.0
        %388 = vmatprep.subr.mxu0 0.0
        %389 = vmatpush1.msra.mxu0 0.0
        %390 = vmatprep.subr.mxu0 0.0
        %391 = vmatpush1.msra.mxu0 0.0
        %392 = vmatprep.subr.mxu0 0.0
        %393 = vmatpush1.msra.mxu0 0.0
        %394 = vmatprep.subr.mxu0 0.0
        %395 = vmatpush1.msra.mxu0 0.0
        %396 = vmatprep.subr.mxu0 0.0
        %397 = vmatpush1.msra.mxu0 0.0
        %398 = vmatprep.subr.mxu0 0.0
        %399 = vmatpush1.msra.mxu0 0.0
        %400 = vmatprep.subr.mxu0 0.0
        %401 = vmatpush1.msra.mxu0 0.0
        %402 = vmatprep.subr.mxu0 0.0
        %403 = vmatpush1.msra.mxu0 0.0
        %404 = vmatprep.subr.mxu0 0.0
        %405 = vmatpush1.msra.mxu0 0.0
        %406 = vmatprep.subr.mxu0 0.0
        %407 = vmatpush1.msra.mxu0 0.0
        %408 = vmatprep.subr.mxu0 0.0
        %409 = vmatpush1.msra.mxu0 0.0
        %410 = vmatprep.subr.mxu0 0.0
        %411 = vmatpush1.msra.mxu0 0.0
        %412 = vmatprep.subr.mxu0 0.0
        %413 = vmatpush1.msra.mxu0 0.0
        %414 = vmatprep.subr.mxu0 0.0
        %415 = vmatpush1.msra.mxu0 0.0
        %416 = vmatprep.subr.mxu0 0.0
        %417 = vmatpush1.msra.mxu0 0.0
        %418 = vmatprep.subr.mxu0 0.0
        %419 = vmatpush1.msra.mxu0 0.0
        %420 = vmatprep.subr.mxu0 0.0
        %421 = vmatpush1.msra.mxu0 0.0
        %422 = vmatprep.subr.mxu0 0.0
        %423 = vmatpush1.msra.mxu0 0.0
        %424 = vmatprep.subr.mxu0 0.0
        %425 = vmatpush1.msra.mxu0 0.0
        %426 = vmatprep.subr.mxu0 0.0
        %427 = vmatpush1.msra.mxu0 0.0
        %428 = vmatprep.mubr.f32.mxu0 0.0
        %429 = vmatmul.mubr.f32.gmra.mrb[0].mxu0 %v359
        %v430 = vpop.f32.mrb[0].mxu0
        %v431 = vadd.f32 0.0, %v430
        %v432 = vpop.f32.mrb[0].mxu0
        %433 = vmatprep.mubr.f32.mxu0 0.0
        %434 = vmatmul.mubr.f32.gmra.mrb[0].mxu0 %v362
        %v435 = vpop.f32.mrb[0].mxu0
        %v436 = vadd.f32 0.0, %v435
        %v437 = vpop.f32.mrb[0].mxu0
        %438 = vdwg.mxu0
        %vm439 = vcmp.gt.f32.partialorder %v431, 0.0
        %vm440 = vcmp.gt.f32.partialorder %v436, 0.0
        %v441 = vstv %s342
        %v442 = vmul.f32 %v441, %v431
        %v443 = vmul.f32 %v441, %v436
        %v444 = vsel %vm439, %v431, %v442
        %v445 = vsel %vm440, %v436, %v443
        %v446 = vlaneseq
        %v447 = vand.u32 %v446, 127
        %vm448 = vcmp.ge.s32.totalorder %v447, 1
        %vm449 = vcmp.lt.s32.totalorder %v447, 128
        %vm450 = vmand %vm448, %vm449
        %v451 = vsel %vm450, 1, 0
        %vm452 = vcmp.eq.s32.totalorder %v451, 1
        %454 = vset.pattern.permute.xlu0 0
        %455 = vperm.xlu0 %454, %v352
        %v456 = vpop.permute.xlu0 %455
        %459 = vset.pattern.permute.xlu0 0
        %460 = vperm.xlu0 %459, %v353
        %v461 = vpop.permute.xlu0 %460
        %v463 = vsel %vm452, %v456, 0.0
        %v464 = vsel %vm452, %v461, 0.0
        %vm465 = vcmp.ge.s32.totalorder %v447, 0
        %vm466 = vmand %vm465, %vm449
        %v467 = vsel %vm466, 1, 0
        %vm468 = vcmp.eq.s32.totalorder %v467, 1
        %469 = vset.pattern.permute.xlu0 1
        %470 = vperm.xlu0 %469, %v352
        %v471 = vpop.permute.xlu0 %470
        %473 = vset.pattern.permute.xlu0 1
        %474 = vperm.xlu0 %473, %v353
        %v475 = vpop.permute.xlu0 %474
        %v477 = vsel %vm468, %v471, 0.0
        %v478 = vsel %vm468, %v475, 0.0
        %vm479 = vcmp.lt.s32.totalorder %v447, 127
        %vm480 = vmand %vm465, %vm479
        %v481 = vsel %vm480, 1, 0
        %vm482 = vcmp.eq.s32.totalorder %v481, 1
        %483 = vset.pattern.permute.xlu0 2
        %484 = vperm.xlu0 %483, %v352
        %v485 = vpop.permute.xlu0 %484
        %487 = vset.pattern.permute.xlu0 2
        %488 = vperm.xlu0 %487, %v353
        %v489 = vpop.permute.xlu0 %488
        %v491 = vsel %vm482, %v485, 0.0
        %v492 = vsel %vm482, %v489, 0.0
        %v493 = vld [vmem:[%s8] sm:$0xff]
        %vm494 = vcmask 130048
        %v496 = vsel %vm494, %v493, 0
        %498 = vmatprep.subr.mxu0 0.0
        %499 = vmatpush1.msra.mxu0 %v350
        %500 = vmatprep.subr.mxu0 0.0
        %501 = vmatpush1.msra.mxu0 %v351
        %502 = vmatprep.subr.mxu0 0.0
        %503 = vmatpush1.msra.mxu0 0.0
        %504 = vmatprep.subr.mxu0 0.0
        %505 = vmatpush1.msra.mxu0 0.0
        %506 = vmatprep.subr.mxu0 0.0
        %507 = vmatpush1.msra.mxu0 0.0
        %508 = vmatprep.subr.mxu0 0.0
        %509 = vmatpush1.msra.mxu0 0.0
        %510 = vmatprep.subr.mxu0 0.0
        %511 = vmatpush1.msra.mxu0 0.0
        %512 = vmatprep.subr.mxu0 0.0
        %513 = vmatpush1.msra.mxu0 0.0
        %514 = vmatprep.subr.mxu0 0.0
        %515 = vmatpush1.msra.mxu0 0.0
        %516 = vmatprep.subr.mxu0 0.0
        %517 = vmatpush1.msra.mxu0 0.0
        %518 = vmatprep.subr.mxu0 0.0
        %519 = vmatpush1.msra.mxu0 0.0
        %520 = vmatprep.subr.mxu0 0.0
        %521 = vmatpush1.msra.mxu0 0.0
        %522 = vmatprep.subr.mxu0 0.0
        %523 = vmatpush1.msra.mxu0 0.0
        %524 = vmatprep.subr.mxu0 0.0
        %525 = vmatpush1.msra.mxu0 0.0
        %526 = vmatprep.subr.mxu0 0.0
        %527 = vmatpush1.msra.mxu0 0.0
        %528 = vmatprep.subr.mxu0 0.0
        %529 = vmatpush1.msra.mxu0 0.0
        %530 = vmatprep.subr.mxu0 0.0
        %531 = vmatpush1.msra.mxu0 0.0
        %532 = vmatprep.subr.mxu0 0.0
        %533 = vmatpush1.msra.mxu0 0.0
        %534 = vmatprep.subr.mxu0 0.0
        %535 = vmatpush1.msra.mxu0 0.0
        %536 = vmatprep.subr.mxu0 0.0
        %537 = vmatpush1.msra.mxu0 0.0
        %538 = vmatprep.subr.mxu0 0.0
        %539 = vmatpush1.msra.mxu0 0.0
        %540 = vmatprep.subr.mxu0 0.0
        %541 = vmatpush1.msra.mxu0 0.0
        %542 = vmatprep.subr.mxu0 0.0
        %543 = vmatpush1.msra.mxu0 0.0
        %544 = vmatprep.subr.mxu0 0.0
        %545 = vmatpush1.msra.mxu0 0.0
        %546 = vmatprep.subr.mxu0 0.0
        %547 = vmatpush1.msra.mxu0 0.0
        %548 = vmatprep.subr.mxu0 0.0
        %549 = vmatpush1.msra.mxu0 0.0
        %550 = vmatprep.subr.mxu0 0.0
        %551 = vmatpush1.msra.mxu0 0.0
        %552 = vmatprep.subr.mxu0 0.0
        %553 = vmatpush1.msra.mxu0 0.0
        %554 = vmatprep.subr.mxu0 0.0
        %555 = vmatpush1.msra.mxu0 0.0
        %556 = vmatprep.subr.mxu0 0.0
        %557 = vmatpush1.msra.mxu0 0.0
        %558 = vmatprep.subr.mxu0 0.0
        %559 = vmatpush1.msra.mxu0 0.0
        %560 = vmatprep.subr.mxu0 0.0
        %561 = vmatpush1.msra.mxu0 0.0
        %562 = vmatprep.mubr.f32.mxu0 0.0
        %563 = vmatmul.mubr.f32.gmra.mrb[0].mxu0 %v496
        %v564 = vpop.f32.mrb[0].mxu0
        %v565 = vadd.f32 0.0, %v564
        %v566 = vpop.f32.mrb[0].mxu0
        %567 = vdwg.mxu0
        %568 = vmatprep.subr.mxu0 0.0
        %569 = vmatpush1.msra.mxu0 %v348
        %570 = vmatprep.subr.mxu0 0.0
        %571 = vmatpush1.msra.mxu0 %v349
        %572 = vmatprep.subr.mxu0 0.0
        %573 = vmatpush1.msra.mxu0 0.0
        %574 = vmatprep.subr.mxu0 0.0
        %575 = vmatpush1.msra.mxu0 0.0
        %576 = vmatprep.subr.mxu0 0.0
        %577 = vmatpush1.msra.mxu0 0.0
        %578 = vmatprep.subr.mxu0 0.0
        %579 = vmatpush1.msra.mxu0 0.0
        %580 = vmatprep.subr.mxu0 0.0
        %581 = vmatpush1.msra.mxu0 0.0
        %582 = vmatprep.subr.mxu0 0.0
        %583 = vmatpush1.msra.mxu0 0.0
        %584 = vmatprep.subr.mxu0 0.0
        %585 = vmatpush1.msra.mxu0 0.0
        %586 = vmatprep.subr.mxu0 0.0
        %587 = vmatpush1.msra.mxu0 0.0
        %588 = vmatprep.subr.mxu0 0.0
        %589 = vmatpush1.msra.mxu0 0.0
        %590 = vmatprep.subr.mxu0 0.0
        %591 = vmatpush1.msra.mxu0 0.0
        %592 = vmatprep.subr.mxu0 0.0
        %593 = vmatpush1.msra.mxu0 0.0
        %594 = vmatprep.subr.mxu0 0.0
        %595 = vmatpush1.msra.mxu0 0.0
        %596 = vmatprep.subr.mxu0 0.0
        %597 = vmatpush1.msra.mxu0 0.0
        %598 = vmatprep.subr.mxu0 0.0
        %599 = vmatpush1.msra.mxu0 0.0
        %600 = vmatprep.subr.mxu0 0.0
        %601 = vmatpush1.msra.mxu0 0.0
        %602 = vmatprep.subr.mxu0 0.0
        %603 = vmatpush1.msra.mxu0 0.0
        %604 = vmatprep.subr.mxu0 0.0
        %605 = vmatpush1.msra.mxu0 0.0
        %606 = vmatprep.subr.mxu0 0.0
        %607 = vmatpush1.msra.mxu0 0.0
        %608 = vmatprep.subr.mxu0 0.0
        %609 = vmatpush1.msra.mxu0 0.0
        %610 = vmatprep.subr.mxu0 0.0
        %611 = vmatpush1.msra.mxu0 0.0
        %612 = vmatprep.subr.mxu0 0.0
        %613 = vmatpush1.msra.mxu0 0.0
        %614 = vmatprep.subr.mxu0 0.0
        %615 = vmatpush1.msra.mxu0 0.0
        %616 = vmatprep.subr.mxu0 0.0
        %617 = vmatpush1.msra.mxu0 0.0
        %618 = vmatprep.subr.mxu0 0.0
        %619 = vmatpush1.msra.mxu0 0.0
        %620 = vmatprep.subr.mxu0 0.0
        %621 = vmatpush1.msra.mxu0 0.0
        %622 = vmatprep.subr.mxu0 0.0
        %623 = vmatpush1.msra.mxu0 0.0
        %624 = vmatprep.subr.mxu0 0.0
        %625 = vmatpush1.msra.mxu0 0.0
        %626 = vmatprep.subr.mxu0 0.0
        %627 = vmatpush1.msra.mxu0 0.0
        %628 = vmatprep.subr.mxu0 0.0
        %629 = vmatpush1.msra.mxu0 0.0
        %630 = vmatprep.subr.mxu0 0.0
        %631 = vmatpush1.msra.mxu0 0.0
        %632 = vmatprep.mubr.f32.mxu0 0.0
        %633 = vmatmul.mubr.f32.gmra.mrb[0].mxu0 %v496
        %v634 = vpop.f32.mrb[0].mxu0
        %v635 = vadd.f32 0.0, %v634
        %v636 = vpop.f32.mrb[0].mxu0
        %637 = vdwg.mxu0
        %v638 = vadd.f32 %v444, %v445
        %639 = vadd.xlane.f32.xlu0 %v638
        %v640 = vpop.xlane.xlu0 %639
        %v641 = vrot.slane %v640, 4
        %v642 = vadd.f32 %v640, %v641
        %v643 = vrot.slane %v642, 2
        %v644 = vadd.f32 %v642, %v643
        %v645 = vrot.slane %v644, 1
        %v646 = vadd.f32 %v644, %v645
        %s647 = vtos %v646
        %s648 = smul.f32 %s647, 0.00048828125
        %v649 = vstv %s648
        %v650 = vsub.f32 %v444, %v649
        %v651 = vsub.f32 %v445, %v649
        %v652 = vmul.f32 %v650, %v650
        %v653 = vmul.f32 %v651, %v651
        %v654 = vadd.f32 %v652, %v653
        %655 = vadd.xlane.f32.xlu0 %v654
        %v656 = vpop.xlane.xlu0 %655
        %v657 = vrot.slane %v656, 4
        %v658 = vadd.f32 %v656, %v657
        %v659 = vrot.slane %v658, 2
        %v660 = vadd.f32 %v658, %v659
        %v661 = vrot.slane %v660, 1
        %v662 = vadd.f32 %v660, %v661
        %s663 = vtos %v662
        %s664 = smul.f32 %s663, 0.00048828125
        %s665 = sadd.f32 %s664, 1e-08
        %v666 = vstv %s665
        %v667 = vrsqrt.pop %v666
        %s668 = vtos %v667
        %v669 = vstv %s668
        %v670 = vmul.f32 %v344, %v669
        %v671 = vmul.f32 %v345, %v669
        %v672 = vmul.f32 %v649, %v670
        %v673 = vmul.f32 %v649, %v671
        %v674 = vsub.f32 %v346, %v672
        %v675 = vsub.f32 %v347, %v673
        %677 = vset.pattern.permute.xlu0 0
        %678 = vperm.xlu0 %677, %v670
        %v679 = vpop.permute.xlu0 %678
        %682 = vset.pattern.permute.xlu0 0
        %683 = vperm.xlu0 %682, %v671
        %v684 = vpop.permute.xlu0 %683
        %v686 = vmul.f32 %v444, %v679
        %v687 = vmul.f32 %v445, %v684
        %689 = vset.pattern.permute.xlu0 0
        %690 = vperm.xlu0 %689, %v674
        %v691 = vpop.permute.xlu0 %690
        %694 = vset.pattern.permute.xlu0 0
        %695 = vperm.xlu0 %694, %v675
        %v696 = vpop.permute.xlu0 %695
        %v698 = vadd.f32 %v686, %v691
        %v699 = vadd.f32 %v687, %v696
        %700 = vrot.lane.b32.xlu0 %v698, 1
        %v701 = vpop.permute.xlu0 %700
        %702 = vrot.lane.b32.xlu0 %v699, 1
        %v703 = vpop.permute.xlu0 %702
        %v704 = vmul.f32 %v463, %v701
        %v705 = vmul.f32 %v464, %v703
        %v706 = vmul.f32 %v477, %v698
        %v707 = vmul.f32 %v478, %v699
        %v708 = vadd.f32 %v704, %v706
        %v709 = vadd.f32 %v705, %v707
        %710 = vrot.lane.b32.xlu0 %v698, 127
        %v711 = vpop.permute.xlu0 %710
        %712 = vrot.lane.b32.xlu0 %v699, 127
        %v713 = vpop.permute.xlu0 %712
        %v714 = vmul.f32 %v491, %v711
        %v715 = vmul.f32 %v492, %v713
        %v716 = vadd.f32 %v708, %v714
        %v717 = vadd.f32 %v709, %v715
        %vm718 = vcmp.gt.f32.partialorder %v716, 0.0
        %vm719 = vcmp.gt.f32.partialorder %v717, 0.0
        %v720 = vstv %s343
        %v721 = vmul.f32 %v720, %v716
        %v722 = vmul.f32 %v720, %v717
        %v723 = vsel %vm718, %v716, %v721
        %v724 = vsel %vm719, %v717, %v722
        %v725 = vadd.f32 %v723, %v724
        %726 = vadd.xlane.f32.xlu0 %v725
        %v727 = vpop.xlane.xlu0 %726
        %v728 = vrot.slane %v727, 4
        %v729 = vadd.f32 %v727, %v728
        %v730 = vrot.slane %v729, 2
        %v731 = vadd.f32 %v729, %v730
        %v732 = vrot.slane %v731, 1
        %v733 = vadd.f32 %v731, %v732
        %s734 = vtos %v733
        %s735 = smul.f32 %s734, 0.00048828125
        %v736 = vstv %s735
        %v737 = vsub.f32 %v723, %v736
        %v738 = vsub.f32 %v724, %v736
        %v739 = vmul.f32 %v737, %v737
        %v740 = vmul.f32 %v738, %v738
        %v741 = vadd.f32 %v739, %v740
        %742 = vadd.xlane.f32.xlu0 %v741
        %v743 = vpop.xlane.xlu0 %742
        %v744 = vrot.slane %v743, 4
        %v745 = vadd.f32 %v743, %v744
        %v746 = vrot.slane %v745, 2
        %v747 = vadd.f32 %v745, %v746
        %v748 = vrot.slane %v747, 1
        %v749 = vadd.f32 %v747, %v748
        %s750 = vtos %v749
        %s751 = smul.f32 %s750, 0.00048828125
        %s752 = sadd.f32 %s751, 1e-08
        %v753 = vstv %s752
        %v754 = vrsqrt.pop %v753
        %s755 = vtos %v754
        %v756 = vstv %s755
        %v757 = vmul.f32 %v348, %v756
        %v758 = vmul.f32 %v349, %v756
        %760 = vset.pattern.permute.xlu0 0
        %761 = vperm.xlu0 %760, %v757
        %v762 = vpop.permute.xlu0 %761
        %765 = vset.pattern.permute.xlu0 0
        %766 = vperm.xlu0 %765, %v758
        %v767 = vpop.permute.xlu0 %766
        %v769 = vmul.f32 %v723, %v762
        %v770 = vmul.f32 %v724, %v767
        %771 = vst [vmem:[#allocation2] sm:$0xff] %v769
        %772 = vst [vmem:[#allocation2 + $0x8] sm:$0xff] %v770
        %s773 = smul.f32 %s735, %s755
        %v774 = vstv %s773
        %v775 = vmul.f32 %v774, %v635
        %v776 = vsub.f32 %v565, %v775
        %v777 = vld [vmem:[%s8] sm:$0xff]
        %v778 = vld [vmem:[#allocation2] sm:$0xff]
        %v779 = vld [vmem:[#allocation2 + $0x8] sm:$0xff]
        %v780 = vld [vmem:[%s341] sm:$0xff]
        %782 = vset.pattern.permute.xlu0 0
        %783 = vperm.xlu0 %782, %v776
        %v784 = vpop.permute.xlu0 %783
        %v787 = vsel %vm494, %v777, 0
        %789 = vmatprep.subr.mxu0 0.0
        %790 = vmatpush1.msra.mxu0 %v778
        %791 = vmatprep.subr.mxu0 0.0
        %792 = vmatpush1.msra.mxu0 %v779
        %793 = vmatprep.subr.mxu0 0.0
        %794 = vmatpush1.msra.mxu0 0.0
        %795 = vmatprep.subr.mxu0 0.0
        %796 = vmatpush1.msra.mxu0 0.0
        %797 = vmatprep.subr.mxu0 0.0
        %798 = vmatpush1.msra.mxu0 0.0
        %799 = vmatprep.subr.mxu0 0.0
        %800 = vmatpush1.msra.mxu0 0.0
        %801 = vmatprep.subr.mxu0 0.0
        %802 = vmatpush1.msra.mxu0 0.0
        %803 = vmatprep.subr.mxu0 0.0
        %804 = vmatpush1.msra.mxu0 0.0
        %805 = vmatprep.subr.mxu0 0.0
        %806 = vmatpush1.msra.mxu0 0.0
        %807 = vmatprep.subr.mxu0 0.0
        %808 = vmatpush1.msra.mxu0 0.0
        %809 = vmatprep.subr.mxu0 0.0
        %810 = vmatpush1.msra.mxu0 0.0
        %811 = vmatprep.subr.mxu0 0.0
        %812 = vmatpush1.msra.mxu0 0.0
        %813 = vmatprep.subr.mxu0 0.0
        %814 = vmatpush1.msra.mxu0 0.0
        %815 = vmatprep.subr.mxu0 0.0
        %816 = vmatpush1.msra.mxu0 0.0
        %817 = vmatprep.subr.mxu0 0.0
        %818 = vmatpush1.msra.mxu0 0.0
        %819 = vmatprep.subr.mxu0 0.0
        %820 = vmatpush1.msra.mxu0 0.0
        %821 = vmatprep.subr.mxu0 0.0
        %822 = vmatpush1.msra.mxu0 0.0
        %823 = vmatprep.subr.mxu0 0.0
        %824 = vmatpush1.msra.mxu0 0.0
        %825 = vmatprep.subr.mxu0 0.0
        %826 = vmatpush1.msra.mxu0 0.0
        %827 = vmatprep.subr.mxu0 0.0
        %828 = vmatpush1.msra.mxu0 0.0
        %829 = vmatprep.subr.mxu0 0.0
        %830 = vmatpush1.msra.mxu0 0.0
        %831 = vmatprep.subr.mxu0 0.0
        %832 = vmatpush1.msra.mxu0 0.0
        %833 = vmatprep.subr.mxu0 0.0
        %834 = vmatpush1.msra.mxu0 0.0
        %835 = vmatprep.subr.mxu0 0.0
        %836 = vmatpush1.msra.mxu0 0.0
        %837 = vmatprep.subr.mxu0 0.0
        %838 = vmatpush1.msra.mxu0 0.0
        %839 = vmatprep.subr.mxu0 0.0
        %840 = vmatpush1.msra.mxu0 0.0
        %841 = vmatprep.subr.mxu0 0.0
        %842 = vmatpush1.msra.mxu0 0.0
        %843 = vmatprep.subr.mxu0 0.0
        %844 = vmatpush1.msra.mxu0 0.0
        %845 = vmatprep.subr.mxu0 0.0
        %846 = vmatpush1.msra.mxu0 0.0
        %847 = vmatprep.subr.mxu0 0.0
        %848 = vmatpush1.msra.mxu0 0.0
        %849 = vmatprep.subr.mxu0 0.0
        %850 = vmatpush1.msra.mxu0 0.0
        %851 = vmatprep.subr.mxu0 0.0
        %852 = vmatpush1.msra.mxu0 0.0
        %853 = vmatprep.mubr.f32.mxu0 0.0
        %854 = vmatmul.mubr.f32.gmra.mrb[0].mxu0 %v787
        %v855 = vpop.f32.mrb[0].mxu0
        %v856 = vadd.f32 %v784, %v855
        %v857 = vpop.f32.mrb[0].mxu0
        %858 = vdwg.mxu0
        %v859 = vadd.f32 %v856, %v780
        %860 = vst [vmem:[%s337] sm:$0xff] %v859
        %s861 = sand.u32 %s226, 1
        %s862 = scalar_lea.sflag [#allocation4], %s861
        %s863 = sand.u32 %s226, 1
        %s864 = smul.addr %s863, 8
        %s865 = scalar_lea.vmem [#allocation6], %s864
        // Predicated region
        $region61: #{tpu_custom_call.1} parent=55 // pred_check
          %p866 = pneg %p236
        $region62: #{tpu_custom_call.1} parent=55 // pred_check_branch
          %868 = sbr.rel (%p866) target = $region64
        $region63: #{tpu_custom_call.1} parent=55 // pred_region
          %s870 = ssub.s32 128, 128
          %871 = vsyncadd %s862, %s870
          %s872 = smul.addr %s24, 128
          %s873 = scalar_lea.hbm %s9, %s872
          %s875 = sshll.u32 %s865, 4
          %s876 = int_to_ptr.vmem [resolvable:$true] %s875
          %878 = dma.vmem_to_hbm [thread:$0]  %s876, 128, %s873, %s862
        $region64: #{tpu_custom_call.1} parent=55 // pred_fallthru
          _
      $region56: #{tpu_custom_call.1} parent=5 // pred_fallthru
        _
      %p879 = scmp.le.s32.totalorder 2, %s19
      // Predicated region
      $region65: #{tpu_custom_call.1} parent=5 // pred_check
        %p880 = pneg %p879
      $region66: #{tpu_custom_call.1} parent=5 // pred_check_branch
        %882 = sbr.rel (%p880) target = $region68
      $region67: #{tpu_custom_call.1} parent=5 // pred_region
        %s883 = ssub.s32 %s19, 2
        // Predicated region
        $region69: #{tpu_custom_call.1} parent=67 // pred_check
          %p884 = pneg %p242
        $region70: #{tpu_custom_call.1} parent=67 // pred_check_branch
          %886 = sbr.rel (%p884) target = $region72
        $region71: #{tpu_custom_call.1} parent=67 // pred_region
          %s887 = sand.u32 %s227, 1
          %s888 = scalar_lea.sflag [#allocation4], %s887
          %s889 = sand.u32 %s227, 1
          %s890 = smul.addr %s889, 8
          %s891 = scalar_lea.vmem [#allocation6], %s890
          %892 = dma.done %s888, 128
        $region72: #{tpu_custom_call.1} parent=67 // pred_fallthru
          _
      $region68: #{tpu_custom_call.1} parent=5 // pred_fallthru
        _
    $region6: #{tpu_custom_call.1} parent=1 // loop_footer
      %s23 = sadd.s32 1, %s19
    $region7: #{tpu_custom_call.1} parent=1 // loop_footer_branch
      %18 = sbr.rel target = $region3
    $region8: #{tpu_custom_call.1} parent=1 // loop_exit
      _
    %893 = vsyncpa [#allocation4], 1
    %s894 = scalar_lea.sflag [#allocation4], 1
    %895 = vsyncpa %s894, 1
    %896 = vsyncpa [#allocation5], 1
    %s897 = scalar_lea.sflag [#allocation5], 1
    %898 = vsyncpa %s897, 1

</llo_original>
